<compile_context>
chip_gen: v7x
topology: tpu7x:2x2x1
jax: 0.10.0
libtpu: 0.0.40
codegen_flags: <defaults>
</compile_context>

<pallas_src>
import functools

import jax
import jax.numpy as jnp
from jax.experimental import pallas as pl
from jax.experimental.pallas import tpu as pltpu

EPS = 1e-6


def _round_up(x, m):
    return (x + m - 1) // m * m


def ffn_kernel(x_ref, gamma_ref, beta_ref, w1_ref, b1_ref, w2_ref, b2_ref, o_ref,
               *, d_in_true):
    # x_ref: (tile_rows, d_in_p) block of the flattened (and possibly padded) input.
    x = x_ref[...].astype(jnp.float32)                       # residual source (f32)
    d_in_p = x.shape[-1]
    inv_d = 1.0 / d_in_true

    # --- LayerNorm over the *true* feature dim (padded cols of x are zero) ---
    mean = jnp.sum(x, axis=-1, keepdims=True) * inv_d
    centered = x - mean
    sq = centered * centered
    if d_in_p != d_in_true:
        # Padded feature columns would contribute mean^2 to the variance; mask them.
        col_mask = jax.lax.broadcasted_iota(jnp.int32, (1, d_in_p), 1) < d_in_true
        sq = jnp.where(col_mask, sq, 0.0)
    var = jnp.sum(sq, axis=-1, keepdims=True) * inv_d
    xn = centered * jax.lax.rsqrt(var + EPS)
    # Padded gamma/beta are zero -> padded columns of xn are exactly zero.
    xn = xn * gamma_ref[...].astype(jnp.float32) + beta_ref[...].astype(jnp.float32)

    # --- w_2(relu(w_1(x))) on the MXU: bf16 operands, f32 accumulation ---
    h = jnp.dot(xn.astype(jnp.bfloat16), w1_ref[...],
                preferred_element_type=jnp.float32)
    h = jnp.maximum(h + b1_ref[...].astype(jnp.float32), 0.0)
    y = jnp.dot(h.astype(jnp.bfloat16), w2_ref[...],
                preferred_element_type=jnp.float32)
    y = y + b2_ref[...].astype(jnp.float32)

    # --- dropout (identity in eval) + residual (f32) ---
    o_ref[...] = (y + x).astype(o_ref.dtype)


@functools.partial(jax.jit, static_argnames=("tile_rows",))
def position_wise_ffn(x, gamma, beta, w1, b1, w2, b2, *, tile_rows=256):
    batch, seq, d_in = x.shape
    d_hid = w1.shape[1]
    n = batch * seq

    # Lane-dense feature dims; sublane-aligned row tiles.
    d_in_p = _round_up(d_in, 128)
    d_hid_p = _round_up(d_hid, 128)
    row_align = 16 if x.dtype == jnp.bfloat16 else 8
    tile_eff = _round_up(min(tile_rows, _round_up(n, row_align)), row_align)
    n_p = _round_up(n, tile_eff)

    # Pad everything (zero pads keep the math exact; see kernel comments).
    x2d = jnp.pad(x.reshape(n, d_in), ((0, n_p - n), (0, d_in_p - d_in)))
    gamma_p = jnp.pad(gamma, (0, d_in_p - d_in)).reshape(1, d_in_p)
    beta_p = jnp.pad(beta, (0, d_in_p - d_in)).reshape(1, d_in_p)
    # Weights in bf16 (MXU-native, half the VMEM/DMA); biases stay f32.
    w1_p = jnp.pad(w1, ((0, d_in_p - d_in), (0, d_hid_p - d_hid))).astype(jnp.bfloat16)
    b1_p = jnp.pad(b1, (0, d_hid_p - d_hid)).reshape(1, d_hid_p)
    w2_p = jnp.pad(w2, ((0, d_hid_p - d_hid), (0, d_in_p - d_in))).astype(jnp.bfloat16)
    b2_p = jnp.pad(b2, (0, d_in_p - d_in)).reshape(1, d_in_p)

    grid = (n_p // tile_eff,)

    # Explicit VMEM budget: double-buffered I/O tiles + weights + intermediates.
    itemsize = jnp.dtype(x.dtype).itemsize
    weight_bytes = 2 * 2 * (d_in_p * d_hid_p + d_hid_p * d_in_p)      # bf16, 2 buffers
    io_bytes = 2 * 2 * tile_eff * d_in_p * itemsize                   # in + out, 2 buffers
    interm_bytes = tile_eff * (6 * d_in_p + 6 * d_hid_p)              # f32+bf16 activations
    needed = weight_bytes + io_bytes + interm_bytes
    vmem_limit = int(min(max(2 * needed, 32 << 20), 64 << 20))

    cost = pl.CostEstimate(
        flops=4 * n_p * d_in_p * d_hid_p + 10 * n_p * d_in_p,
        transcendentals=n_p,
        bytes_accessed=2 * n_p * d_in_p * itemsize
        + 2 * (d_in_p * d_hid_p + d_hid_p * d_in_p),
    )

    out2d = pl.pallas_call(
        functools.partial(ffn_kernel, d_in_true=d_in),
        out_shape=jax.ShapeDtypeStruct((n_p, d_in_p), x.dtype),
        grid_spec=pltpu.PrefetchScalarGridSpec(
            num_scalar_prefetch=0,
            grid=grid,
            in_specs=[
                pl.BlockSpec((tile_eff, d_in_p), lambda i: (i, 0)),    # x rows
                pl.BlockSpec((1, d_in_p), lambda i: (0, 0)),           # gamma
                pl.BlockSpec((1, d_in_p), lambda i: (0, 0)),           # beta
                pl.BlockSpec((d_in_p, d_hid_p), lambda i: (0, 0)),     # W1 (bf16)
                pl.BlockSpec((1, d_hid_p), lambda i: (0, 0)),          # b1
                pl.BlockSpec((d_hid_p, d_in_p), lambda i: (0, 0)),     # W2 (bf16)
                pl.BlockSpec((1, d_in_p), lambda i: (0, 0)),           # b2
            ],
            out_specs=pl.BlockSpec((tile_eff, d_in_p), lambda i: (i, 0)),
        ),
        compiler_params=pltpu.CompilerParams(
            dimension_semantics=("parallel",),
            vmem_limit_bytes=vmem_limit,
        ),
        cost_estimate=cost,
    )(x2d, gamma_p, beta_p, w1_p, b1_p, w2_p, b2_p)

    return out2d[:n, :d_in].reshape(batch, seq, d_in)


def init_params(key, d_in, d_hid, dtype=jnp.float32):
    """Deterministic init mimicking nn.Linear defaults (uniform +/- 1/sqrt(fan_in))."""
    k1, k2, k3, k4 = jax.random.split(key, 4)
    lim1 = 1.0 / (d_in ** 0.5)
    lim2 = 1.0 / (d_hid ** 0.5)
    # stored as (in_features, out_features) so kernel does x @ W
    w1 = jax.random.uniform(k1, (d_in, d_hid), dtype, -lim1, lim1)
    b1 = jax.random.uniform(k2, (d_hid,), dtype, -lim1, lim1)
    w2 = jax.random.uniform(k3, (d_hid, d_in), dtype, -lim2, lim2)
    b2 = jax.random.uniform(k4, (d_in,), dtype, -lim2, lim2)
    gamma = jnp.ones((d_in,), dtype)   # LayerNorm weight
    beta = jnp.zeros((d_in,), dtype)   # LayerNorm bias
    return gamma, beta, w1, b1, w2, b2


def reference(x, gamma, beta, w1, b1, w2, b2, matmul_dtype=jnp.float32):
    xf = x.astype(jnp.float32)
    mean = jnp.mean(xf, axis=-1, keepdims=True)
    var = jnp.mean((xf - mean) ** 2, axis=-1, keepdims=True)
    xn = (xf - mean) * jax.lax.rsqrt(var + EPS) * gamma + beta
    h = jnp.dot(xn.astype(matmul_dtype), w1.astype(matmul_dtype),
                preferred_element_type=jnp.float32) + b1
    h = jnp.maximum(h, 0.0)
    y = jnp.dot(h.astype(matmul_dtype), w2.astype(matmul_dtype),
                preferred_element_type=jnp.float32) + b2
    return (y + xf).astype(x.dtype)


if __name__ == "__main__":
    key = jax.random.PRNGKey(0)
    batch, seq, d_in, d_hid = 2, 8, 32, 64

    kx, kp = jax.random.split(key)
    x = jax.random.normal(kx, (batch, seq, d_in), jnp.float32)
    gamma, beta, w1, b1, w2, b2 = init_params(kp, d_in, d_hid)

    out = position_wise_ffn(x, gamma, beta, w1, b1, w2, b2)
    out = jax.block_until_ready(out)
    assert out.shape == x.shape
    assert jnp.all(jnp.isfinite(out))

    # Tight check vs. a reference using the same bf16-operand / f32-accum matmuls.
    ref_bf16 = reference(x, gamma, beta, w1, b1, w2, b2, matmul_dtype=jnp.bfloat16)
    assert jnp.allclose(out, ref_bf16, atol=2e-3, rtol=2e-3), "mismatch vs bf16 reference"

    # Looser sanity check vs. the full-f32 reference (bf16 operand rounding).
    ref_f32 = reference(x, gamma, beta, w1, b1, w2, b2, matmul_dtype=jnp.float32)
    assert jnp.allclose(out, ref_f32, atol=5e-2, rtol=5e-2), "mismatch vs f32 reference"

    print("KERNEL_OK")
</pallas_src>

<mosaic_0001>
module attributes {stable_mosaic.version = 11 : i64} {
  func.func @ffn_kernel(%arg0: i32, %arg1: memref<16x128xf32, #tpu.memory_space<vmem>>, %arg2: memref<1x128xf32, #tpu.memory_space<vmem>>, %arg3: memref<1x128xf32, #tpu.memory_space<vmem>>, %arg4: memref<128x128xbf16, #tpu.memory_space<vmem>>, %arg5: memref<1x128xf32, #tpu.memory_space<vmem>>, %arg6: memref<128x128xbf16, #tpu.memory_space<vmem>>, %arg7: memref<1x128xf32, #tpu.memory_space<vmem>>, %arg8: memref<16x128xf32, #tpu.memory_space<vmem>>) attributes {dimension_semantics = [#tpu.dimension_semantics<parallel>], iteration_bounds = array<i64: 1>, scalar_prefetch = 0 : i64, scratch_operands = 0 : i64, tpu.core_type = #tpu.core_type<tc>, window_params = [{transform_indices = @transform_0, window_bounds = array<i64: 16, 128>}, {pipeline_mode = #tpu.pipeline_mode<synchronous>, transform_indices = @transform_1, window_bounds = array<i64: 1, 128>}, {pipeline_mode = #tpu.pipeline_mode<synchronous>, transform_indices = @transform_2, window_bounds = array<i64: 1, 128>}, {pipeline_mode = #tpu.pipeline_mode<synchronous>, transform_indices = @transform_3, window_bounds = array<i64: 128, 128>}, {pipeline_mode = #tpu.pipeline_mode<synchronous>, transform_indices = @transform_4, window_bounds = array<i64: 1, 128>}, {pipeline_mode = #tpu.pipeline_mode<synchronous>, transform_indices = @transform_5, window_bounds = array<i64: 128, 128>}, {pipeline_mode = #tpu.pipeline_mode<synchronous>, transform_indices = @transform_6, window_bounds = array<i64: 1, 128>}, {transform_indices = @transform_7, window_bounds = array<i64: 16, 128>}]} {
    %c0 = arith.constant 0 : index
    %c0_0 = arith.constant 0 : index
    %0 = vector.load %arg1[%c0, %c0_0] : memref<16x128xf32, #tpu.memory_space<vmem>>, vector<16x128xf32>
    %cst = arith.constant dense<0.000000e+00> : vector<16xf32>
    %1 = vector.multi_reduction <add>, %0, %cst [1] : vector<16x128xf32> to vector<16xf32>
    %2 = vector.shape_cast %1 : vector<16xf32> to vector<16x1xf32>
    %cst_1 = arith.constant 3.125000e-02 : f32
    %3 = vector.broadcast %cst_1 : f32 to vector<16x1xf32>
    %4 = arith.mulf %2, %3 : vector<16x1xf32>
    %5 = vector.broadcast %4 : vector<16x1xf32> to vector<16x128xf32>
    %6 = arith.subf %0, %5 : vector<16x128xf32>
    %7 = arith.mulf %6, %6 : vector<16x128xf32>
    %8 = tpu.iota {dimensions = array<i32: 1>} : vector<1x128xi32>
    %c32_i32 = arith.constant 32 : i32
    %9 = vector.broadcast %c32_i32 : i32 to vector<1x128xi32>
    %10 = arith.cmpi slt, %8, %9 : vector<1x128xi32>
    %cst_2 = arith.constant 0.000000e+00 : f32
    %11 = vector.shape_cast %10 : vector<1x128xi1> to vector<1x128xi1>
    %12 = vector.broadcast %11 : vector<1x128xi1> to vector<16x128xi1>
    %13 = vector.broadcast %cst_2 : f32 to vector<16x128xf32>
    %14 = arith.select %12, %7, %13 : vector<16x128xi1>, vector<16x128xf32>
    %cst_3 = arith.constant dense<0.000000e+00> : vector<16xf32>
    %15 = vector.multi_reduction <add>, %14, %cst_3 [1] : vector<16x128xf32> to vector<16xf32>
    %16 = vector.shape_cast %15 : vector<16xf32> to vector<16x1xf32>
    %cst_4 = arith.constant 3.125000e-02 : f32
    %17 = vector.broadcast %cst_4 : f32 to vector<16x1xf32>
    %18 = arith.mulf %16, %17 : vector<16x1xf32>
    %cst_5 = arith.constant 9.99999997E-7 : f32
    %19 = vector.broadcast %cst_5 : f32 to vector<16x1xf32>
    %20 = arith.addf %18, %19 : vector<16x1xf32>
    %21 = math.rsqrt %20 : vector<16x1xf32>
    %22 = vector.broadcast %21 : vector<16x1xf32> to vector<16x128xf32>
    %23 = arith.mulf %6, %22 : vector<16x128xf32>
    %c0_6 = arith.constant 0 : index
    %c0_7 = arith.constant 0 : index
    %24 = vector.load %arg2[%c0_6, %c0_7] : memref<1x128xf32, #tpu.memory_space<vmem>>, vector<1x128xf32>
    %25 = vector.broadcast %24 : vector<1x128xf32> to vector<16x128xf32>
    %26 = arith.mulf %23, %25 : vector<16x128xf32>
    %c0_8 = arith.constant 0 : index
    %c0_9 = arith.constant 0 : index
    %27 = vector.load %arg3[%c0_8, %c0_9] : memref<1x128xf32, #tpu.memory_space<vmem>>, vector<1x128xf32>
    %28 = vector.broadcast %27 : vector<1x128xf32> to vector<16x128xf32>
    %29 = arith.addf %26, %28 : vector<16x128xf32>
    %30 = arith.truncf %29 : vector<16x128xf32> to vector<16x128xbf16>
    %c0_10 = arith.constant 0 : index
    %c0_11 = arith.constant 0 : index
    %31 = vector.load %arg4[%c0_10, %c0_11] : memref<128x128xbf16, #tpu.memory_space<vmem>>, vector<128x128xbf16>
    %cst_12 = arith.constant dense<0.000000e+00> : vector<16x128xf32>
    %32 = tpu.matmul %30, %31, %cst_12 {dimension_numbers = #tpu.dot_dimension_numbers<[1], [0], [0], [1], [0, 0, 1, 1], [], []>} : vector<16x128xbf16>, vector<128x128xbf16>, vector<16x128xf32> -> vector<16x128xf32>
    %c0_13 = arith.constant 0 : index
    %c0_14 = arith.constant 0 : index
    %33 = vector.load %arg5[%c0_13, %c0_14] : memref<1x128xf32, #tpu.memory_space<vmem>>, vector<1x128xf32>
    %34 = vector.broadcast %33 : vector<1x128xf32> to vector<16x128xf32>
    %35 = arith.addf %32, %34 : vector<16x128xf32>
    %cst_15 = arith.constant 0.000000e+00 : f32
    %36 = vector.broadcast %cst_15 : f32 to vector<16x128xf32>
    %37 = arith.maximumf %35, %36 : vector<16x128xf32>
    %38 = arith.truncf %37 : vector<16x128xf32> to vector<16x128xbf16>
    %c0_16 = arith.constant 0 : index
    %c0_17 = arith.constant 0 : index
    %39 = vector.load %arg6[%c0_16, %c0_17] : memref<128x128xbf16, #tpu.memory_space<vmem>>, vector<128x128xbf16>
    %cst_18 = arith.constant dense<0.000000e+00> : vector<16x128xf32>
    %40 = tpu.matmul %38, %39, %cst_18 {dimension_numbers = #tpu.dot_dimension_numbers<[1], [0], [0], [1], [0, 0, 1, 1], [], []>} : vector<16x128xbf16>, vector<128x128xbf16>, vector<16x128xf32> -> vector<16x128xf32>
    %c0_19 = arith.constant 0 : index
    %c0_20 = arith.constant 0 : index
    %41 = vector.load %arg7[%c0_19, %c0_20] : memref<1x128xf32, #tpu.memory_space<vmem>>, vector<1x128xf32>
    %42 = vector.broadcast %41 : vector<1x128xf32> to vector<16x128xf32>
    %43 = arith.addf %40, %42 : vector<16x128xf32>
    %44 = arith.addf %43, %0 : vector<16x128xf32>
    %c0_21 = arith.constant 0 : index
    %c0_22 = arith.constant 0 : index
    %45 = vector.load %arg8[%c0_21, %c0_22] : memref<16x128xf32, #tpu.memory_space<vmem>>, vector<16x128xf32>
    tpu.vector_store %arg8[%c0_21, %c0_22], %44 {strides = array<i32>} : memref<16x128xf32, #tpu.memory_space<vmem>>, vector<16x128xf32>,
    return
  }
  func.func @transform_0(%arg0: i32) -> (i32, i32) {
    %c0_i32 = arith.constant 0 : i32
    %c0_i32_0 = arith.constant 0 : i32
    return %arg0, %c0_i32 : i32, i32
  }
  func.func @transform_1(%arg0: i32) -> (i32, i32) {
    %c0_i32 = arith.constant 0 : i32
    %c0_i32_0 = arith.constant 0 : i32
    %c0_i32_1 = arith.constant 0 : i32
    return %c0_i32, %c0_i32_0 : i32, i32
  }
  func.func @transform_2(%arg0: i32) -> (i32, i32) {
    %c0_i32 = arith.constant 0 : i32
    %c0_i32_0 = arith.constant 0 : i32
    %c0_i32_1 = arith.constant 0 : i32
    return %c0_i32, %c0_i32_0 : i32, i32
  }
  func.func @transform_3(%arg0: i32) -> (i32, i32) {
    %c0_i32 = arith.constant 0 : i32
    %c0_i32_0 = arith.constant 0 : i32
    %c0_i32_1 = arith.constant 0 : i32
    return %c0_i32, %c0_i32_0 : i32, i32
  }
  func.func @transform_4(%arg0: i32) -> (i32, i32) {
    %c0_i32 = arith.constant 0 : i32
    %c0_i32_0 = arith.constant 0 : i32
    %c0_i32_1 = arith.constant 0 : i32
    return %c0_i32, %c0_i32_0 : i32, i32
  }
  func.func @transform_5(%arg0: i32) -> (i32, i32) {
    %c0_i32 = arith.constant 0 : i32
    %c0_i32_0 = arith.constant 0 : i32
    %c0_i32_1 = arith.constant 0 : i32
    return %c0_i32, %c0_i32_0 : i32, i32
  }
  func.func @transform_6(%arg0: i32) -> (i32, i32) {
    %c0_i32 = arith.constant 0 : i32
    %c0_i32_0 = arith.constant 0 : i32
    %c0_i32_1 = arith.constant 0 : i32
    return %c0_i32, %c0_i32_0 : i32, i32
  }
  func.func @transform_7(%arg0: i32) -> (i32, i32) {
    %c0_i32 = arith.constant 0 : i32
    %c0_i32_0 = arith.constant 0 : i32
    return %arg0, %c0_i32 : i32, i32
  }
}

</mosaic_0001>

<llo_original>
// kernel: position_wise_ffn.1
$region0: #{position_wise_ffn.1}
  #allocation0 [shape = 'u32[]', space=smem, size = 0x4, offset = 0x4, fixed_abs, tag = 'smem constant byte address 0x4 - core index']
  #allocation1 [shape = 'u32[144,128]{1,0:T(1,128)}', space=vmem, size = 0x12000, scoped, tag = 'internal scratch']
  %s0 = inlined_call_operand.vmem [shape: f32[16,128], index: 0, kind: input, shape index: {}]
  %s1 = inlined_call_operand.vmem [shape: f32[1,128], index: 1, kind: input, shape index: {}]
  %s2 = inlined_call_operand.vmem [shape: f32[1,128], index: 2, kind: input, shape index: {}]
  %s3 = inlined_call_operand.vmem [shape: bf16[128,128], index: 3, kind: input, shape index: {}]
  %s4 = inlined_call_operand.vmem [shape: f32[1,128], index: 4, kind: input, shape index: {}]
  %s5 = inlined_call_operand.vmem [shape: bf16[128,128], index: 5, kind: input, shape index: {}]
  %s6 = inlined_call_operand.vmem [shape: f32[1,128], index: 6, kind: input, shape index: {}]
  %s7 = inlined_call_operand.vmem [shape: f32[16,128], index: 7, kind: output, shape index: {}]
  %s8 = sld [smem:[#allocation0]]
  $region38: #{position_wise_ffn.1} parent=0
    _
  %s10 = ssub.s32 1, %s8
  %s11 = scalar_select 0, %s10, %s8
  // Predicated region
  $region2: #{position_wise_ffn.1} parent=0 // pred_check
    _
  $region3: #{position_wise_ffn.1} parent=0 // pred_check_branch
    %13 = sbr.rel (0) target = $region5
  $region4: #{position_wise_ffn.1} parent=0 // pred_region
    _
  $region5: #{position_wise_ffn.1} parent=0 // pred_fallthru
    _
  // Predicated region
  $region6: #{position_wise_ffn.1} parent=0 // pred_check
    _
  $region7: #{position_wise_ffn.1} parent=0 // pred_check_branch
    %15 = sbr.rel (0) target = $region9
  $region8: #{position_wise_ffn.1} parent=0 // pred_region
    _
  $region9: #{position_wise_ffn.1} parent=0 // pred_fallthru
    _
  // Predicated region
  $region10: #{position_wise_ffn.1} parent=0 // pred_check
    _
  $region11: #{position_wise_ffn.1} parent=0 // pred_check_branch
    %17 = sbr.rel (0) target = $region13
  $region12: #{position_wise_ffn.1} parent=0 // pred_region
    _
  $region13: #{position_wise_ffn.1} parent=0 // pred_fallthru
    _
  // Predicated region
  $region14: #{position_wise_ffn.1} parent=0 // pred_check
    _
  $region15: #{position_wise_ffn.1} parent=0 // pred_check_branch
    %19 = sbr.rel (0) target = $region17
  $region16: #{position_wise_ffn.1} parent=0 // pred_region
    _
  $region17: #{position_wise_ffn.1} parent=0 // pred_fallthru
    _
  // Predicated region
  $region18: #{position_wise_ffn.1} parent=0 // pred_check
    _
  $region19: #{position_wise_ffn.1} parent=0 // pred_check_branch
    %21 = sbr.rel (0) target = $region21
  $region20: #{position_wise_ffn.1} parent=0 // pred_region
    _
  $region21: #{position_wise_ffn.1} parent=0 // pred_fallthru
    _
  // Predicated region
  $region22: #{position_wise_ffn.1} parent=0 // pred_check
    _
  $region23: #{position_wise_ffn.1} parent=0 // pred_check_branch
    %23 = sbr.rel (0) target = $region25
  $region24: #{position_wise_ffn.1} parent=0 // pred_region
    _
  $region25: #{position_wise_ffn.1} parent=0 // pred_fallthru
    _
  // Predicated region
  $region26: #{position_wise_ffn.1} parent=0 // pred_check
    _
  $region27: #{position_wise_ffn.1} parent=0 // pred_check_branch
    %25 = sbr.rel (0) target = $region29
  $region28: #{position_wise_ffn.1} parent=0 // pred_region
    _
  $region29: #{position_wise_ffn.1} parent=0 // pred_fallthru
    _
  %v27 = vld [vmem:[%s0] sm:$0xff]
  %v28 = vld [vmem:[%s0 + $0x8] sm:$0xff]
  %29 = vadd.xlane.f32.xlu0 %v27
  %v30 = vpop.xlane.xlu0 %29
  %31 = vadd.xlane.f32.xlu0 %v28
  %v32 = vpop.xlane.xlu0 %31
  %v33 = vmul.f32 %v30, 0.03125
  %v34 = vmul.f32 %v32, 0.03125
  %v35 = vsub.f32 %v27, %v33
  %v36 = vsub.f32 %v28, %v34
  %v37 = vmul.f32 %v35, %v35
  %v38 = vmul.f32 %v36, %v36
  %v39 = vlaneseq
  %v40 = vand.u32 %v39, 127
  %vm41 = vcmp.lt.s32.totalorder %v40, 32
  %v42 = vsel %vm41, 1, 0
  %vm43 = vcmp.eq.s32.totalorder %v42, 1
  %v44 = vsel %vm43, %v37, 0.0
  %v45 = vsel %vm43, %v38, 0.0
  %46 = vadd.xlane.f32.xlu0 %v44
  %v47 = vpop.xlane.xlu0 %46
  %48 = vadd.xlane.f32.xlu0 %v45
  %v49 = vpop.xlane.xlu0 %48
  %v50 = vmul.f32 %v47, 0.03125
  %v51 = vmul.f32 %v49, 0.03125
  %v52 = vadd.f32 %v50, 1e-06
  %v53 = vadd.f32 %v51, 1e-06
  %v54 = vrsqrt.pop %v52
  %v55 = vrsqrt.pop %v53
  %v56 = vmul.f32 %v35, %v54
  %v57 = vmul.f32 %v36, %v55
  %v58 = vld [vmem:[%s1] sm:$0x1]
  %v60 = vlaneseq
  %v61 = vshrl.u32 %v60, 7
  %v62 = vsub.s32 0, %v61
  %v63 = vrot.slane %v58, %v62
  %v65 = vmul.f32 %v56, %v63
  %v66 = vmul.f32 %v57, %v63
  %v67 = vld [vmem:[%s2] sm:$0x1]
  %v69 = vlaneseq
  %v70 = vshrl.u32 %v69, 7
  %v71 = vsub.s32 0, %v70
  %v72 = vrot.slane %v67, %v71
  %v74 = vadd.f32 %v65, %v72
  %v75 = vadd.f32 %v66, %v72
  %v76 = vpack.c.bf16 %v75, %v74
  %v77 = vld [vmem:[%s3] sm:$0xf]
  %v78 = vld [vmem:[%s3 + $0x4] sm:$0xf]
  %v79 = vld [vmem:[%s3 + $0x8] sm:$0xf]
  %v80 = vld [vmem:[%s3 + $0xc] sm:$0xf]
  %v81 = vld [vmem:[%s3 + $0x10] sm:$0xf]
  %v82 = vld [vmem:[%s3 + $0x14] sm:$0xf]
  %v83 = vld [vmem:[%s3 + $0x18] sm:$0xf]
  %v84 = vld [vmem:[%s3 + $0x1c] sm:$0xf]
  %v85 = vld [vmem:[%s3 + $0x20] sm:$0xf]
  %v86 = vld [vmem:[%s3 + $0x24] sm:$0xf]
  %v87 = vld [vmem:[%s3 + $0x28] sm:$0xf]
  %v88 = vld [vmem:[%s3 + $0x2c] sm:$0xf]
  %v89 = vld [vmem:[%s3 + $0x30] sm:$0xf]
  %v90 = vld [vmem:[%s3 + $0x34] sm:$0xf]
  %v91 = vld [vmem:[%s3 + $0x38] sm:$0xf]
  %v92 = vld [vmem:[%s3 + $0x3c] sm:$0xf]
  %v93 = vld [vmem:[%s4] sm:$0x1]
  %v95 = vlaneseq
  %v96 = vshrl.u32 %v95, 7
  %v97 = vsub.s32 0, %v96
  %v98 = vrot.slane %v93, %v97
  %v116 = vunpack.c.l.b16 %v77
  %v117 = vunpack.c.l.b16 %v78
  %v118 = vunpack.c.l.b16 %v79
  %v119 = vunpack.c.l.b16 %v80
  %v120 = vunpack.c.l.b16 %v81
  %v121 = vunpack.c.l.b16 %v82
  %v122 = vunpack.c.l.b16 %v83
  %v123 = vunpack.c.l.b16 %v84
  %v124 = vunpack.c.l.b16 %v85
  %v125 = vunpack.c.l.b16 %v86
  %v126 = vunpack.c.l.b16 %v87
  %v127 = vunpack.c.l.b16 %v88
  %v128 = vunpack.c.l.b16 %v89
  %v129 = vunpack.c.l.b16 %v90
  %v130 = vunpack.c.l.b16 %v91
  %v131 = vunpack.c.l.b16 %v92
  %v132 = vpack.c.b16 %v117, %v116
  %v133 = vpack.c.b16 %v119, %v118
  %v134 = vpack.c.b16 %v121, %v120
  %v135 = vpack.c.b16 %v123, %v122
  %v136 = vpack.c.b16 %v125, %v124
  %v137 = vpack.c.b16 %v127, %v126
  %v138 = vpack.c.b16 %v129, %v128
  %v139 = vpack.c.b16 %v131, %v130
  %148 = vmatprep.subr.bf16.mxu0 0
  %149 = vmatpush1.bf16.msra.mxu0 %v132
  %150 = vmatprep.subr.bf16.mxu0 0
  %151 = vmatpush1.bf16.msra.mxu0 %v133
  %152 = vmatprep.subr.bf16.mxu0 0
  %153 = vmatpush1.bf16.msra.mxu0 %v134
  %154 = vmatprep.subr.bf16.mxu0 0
  %155 = vmatpush1.bf16.msra.mxu0 %v135
  %156 = vmatprep.subr.bf16.mxu0 0
  %157 = vmatpush1.bf16.msra.mxu0 %v136
  %158 = vmatprep.subr.bf16.mxu0 0
  %159 = vmatpush1.bf16.msra.mxu0 %v137
  %160 = vmatprep.subr.bf16.mxu0 0
  %161 = vmatpush1.bf16.msra.mxu0 %v138
  %162 = vmatprep.subr.bf16.mxu0 0
  %163 = vmatpush1.bf16.msra.mxu0 %v139
  %164 = vmatprep.subr.bf16.mxu0 0
  %165 = vmatpush1.bf16.msra.mxu0 0
  %166 = vmatprep.subr.bf16.mxu0 0
  %167 = vmatpush1.bf16.msra.mxu0 0
  %168 = vmatprep.subr.bf16.mxu0 0
  %169 = vmatpush1.bf16.msra.mxu0 0
  %170 = vmatprep.subr.bf16.mxu0 0
  %171 = vmatpush1.bf16.msra.mxu0 0
  %172 = vmatprep.subr.bf16.mxu0 0
  %173 = vmatpush1.bf16.msra.mxu0 0
  %174 = vmatprep.subr.bf16.mxu0 0
  %175 = vmatpush1.bf16.msra.mxu0 0
  %176 = vmatprep.subr.bf16.mxu0 0
  %177 = vmatpush1.bf16.msra.mxu0 0
  %178 = vmatprep.subr.bf16.mxu0 0
  %179 = vmatpush1.bf16.msra.mxu0 0
  %180 = vmatprep.mubr.bf16.mxu0 0
  %181 = vmatmul.mubr.bf16.gmra.mrb[0].mxu0 %v76
  %v182 = vpop.f32.mrb[0].mxu0
  %v183 = vadd.f32 %v98, %v182
  %v184 = vpop.f32.mrb[0].mxu0
  %v185 = vpop.f32.mrb[0].mxu0
  %v186 = vadd.f32 %v98, %v185
  %v187 = vpop.f32.mrb[0].mxu0
  %188 = vdwg.mxu0
  %v189 = vmax.f32 %v183, 0.0
  %v190 = vmax.f32 %v186, 0.0
  %v191 = vpack.c.bf16 %v190, %v189
  %v192 = vld [vmem:[%s5] sm:$0xf]
  %v193 = vld [vmem:[%s5 + $0x4] sm:$0xf]
  %v194 = vld [vmem:[%s5 + $0x8] sm:$0xf]
  %v195 = vld [vmem:[%s5 + $0xc] sm:$0xf]
  %v196 = vld [vmem:[%s5 + $0x10] sm:$0xf]
  %v197 = vld [vmem:[%s5 + $0x14] sm:$0xf]
  %v198 = vld [vmem:[%s5 + $0x18] sm:$0xf]
  %v199 = vld [vmem:[%s5 + $0x1c] sm:$0xf]
  %v200 = vld [vmem:[%s5 + $0x20] sm:$0xf]
  %v201 = vld [vmem:[%s5 + $0x24] sm:$0xf]
  %v202 = vld [vmem:[%s5 + $0x28] sm:$0xf]
  %v203 = vld [vmem:[%s5 + $0x2c] sm:$0xf]
  %v204 = vld [vmem:[%s5 + $0x30] sm:$0xf]
  %v205 = vld [vmem:[%s5 + $0x34] sm:$0xf]
  %v206 = vld [vmem:[%s5 + $0x38] sm:$0xf]
  %v207 = vld [vmem:[%s5 + $0x3c] sm:$0xf]
  %v208 = vld [vmem:[%s6] sm:$0x1]
  %v210 = vlaneseq
  %v211 = vshrl.u32 %v210, 7
  %v212 = vsub.s32 0, %v211
  %v213 = vrot.slane %v208, %v212
  %v231 = vunpack.c.l.b16 %v192
  %v232 = vunpack.c.l.b16 %v193
  %v233 = vunpack.c.l.b16 %v194
  %v234 = vunpack.c.l.b16 %v195
  %v235 = vunpack.c.l.b16 %v196
  %v236 = vunpack.c.l.b16 %v197
  %v237 = vunpack.c.l.b16 %v198
  %v238 = vunpack.c.l.b16 %v199
  %v239 = vunpack.c.l.b16 %v200
  %v240 = vunpack.c.l.b16 %v201
  %v241 = vunpack.c.l.b16 %v202
  %v242 = vunpack.c.l.b16 %v203
  %v243 = vunpack.c.l.b16 %v204
  %v244 = vunpack.c.l.b16 %v205
  %v245 = vunpack.c.l.b16 %v206
  %v246 = vunpack.c.l.b16 %v207
  %v247 = vpack.c.b16 %v232, %v231
  %v248 = vpack.c.b16 %v234, %v233
  %v249 = vpack.c.b16 %v236, %v235
  %v250 = vpack.c.b16 %v238, %v237
  %v251 = vpack.c.b16 %v240, %v239
  %v252 = vpack.c.b16 %v242, %v241
  %v253 = vpack.c.b16 %v244, %v243
  %v254 = vpack.c.b16 %v246, %v245
  %263 = vmatprep.subr.bf16.mxu0 0
  %264 = vmatpush1.bf16.msra.mxu0 %v247
  %265 = vmatprep.subr.bf16.mxu0 0
  %266 = vmatpush1.bf16.msra.mxu0 %v248
  %267 = vmatprep.subr.bf16.mxu0 0
  %268 = vmatpush1.bf16.msra.mxu0 %v249
  %269 = vmatprep.subr.bf16.mxu0 0
  %270 = vmatpush1.bf16.msra.mxu0 %v250
  %271 = vmatprep.subr.bf16.mxu0 0
  %272 = vmatpush1.bf16.msra.mxu0 %v251
  %273 = vmatprep.subr.bf16.mxu0 0
  %274 = vmatpush1.bf16.msra.mxu0 %v252
  %275 = vmatprep.subr.bf16.mxu0 0
  %276 = vmatpush1.bf16.msra.mxu0 %v253
  %277 = vmatprep.subr.bf16.mxu0 0
  %278 = vmatpush1.bf16.msra.mxu0 %v254
  %279 = vmatprep.subr.bf16.mxu0 0
  %280 = vmatpush1.bf16.msra.mxu0 0
  %281 = vmatprep.subr.bf16.mxu0 0
  %282 = vmatpush1.bf16.msra.mxu0 0
  %283 = vmatprep.subr.bf16.mxu0 0
  %284 = vmatpush1.bf16.msra.mxu0 0
  %285 = vmatprep.subr.bf16.mxu0 0
  %286 = vmatpush1.bf16.msra.mxu0 0
  %287 = vmatprep.subr.bf16.mxu0 0
  %288 = vmatpush1.bf16.msra.mxu0 0
  %289 = vmatprep.subr.bf16.mxu0 0
  %290 = vmatpush1.bf16.msra.mxu0 0
  %291 = vmatprep.subr.bf16.mxu0 0
  %292 = vmatpush1.bf16.msra.mxu0 0
  %293 = vmatprep.subr.bf16.mxu0 0
  %294 = vmatpush1.bf16.msra.mxu0 0
  %295 = vmatprep.mubr.bf16.mxu0 0
  %296 = vmatmul.mubr.bf16.gmra.mrb[0].mxu0 %v191
  %v297 = vpop.f32.mrb[0].mxu0
  %v298 = vadd.f32 %v213, %v297
  %v299 = vpop.f32.mrb[0].mxu0
  %v300 = vpop.f32.mrb[0].mxu0
  %v301 = vadd.f32 %v213, %v300
  %v302 = vpop.f32.mrb[0].mxu0
  %303 = vdwg.mxu0
  %v304 = vadd.f32 %v298, %v27
  %v305 = vadd.f32 %v301, %v28
  %306 = vst [vmem:[%s7] sm:$0xff] %v304
  %307 = vst [vmem:[%s7 + $0x8] sm:$0xff] %v305
  // Predicated region
  $region30: #{position_wise_ffn.1} parent=0 // pred_check
    _
  $region31: #{position_wise_ffn.1} parent=0 // pred_check_branch
    %309 = sbr.rel (0) target = $region33
  $region32: #{position_wise_ffn.1} parent=0 // pred_region
    _
  $region33: #{position_wise_ffn.1} parent=0 // pred_fallthru
    _
  // Predicated region
  $region34: #{position_wise_ffn.1} parent=0 // pred_check
    _
  $region35: #{position_wise_ffn.1} parent=0 // pred_check_branch
    %311 = sbr.rel (0) target = $region37
  $region36: #{position_wise_ffn.1} parent=0 // pred_region
    _
  $region37: #{position_wise_ffn.1} parent=0 // pred_fallthru
    _

</llo_original>
